<compile_context>
chip_gen: v5e
topology: v5e:2x2
jax: 0.10.0
libtpu: 0.0.40
codegen_flags: <defaults>
</compile_context>

<pallas_src>
import functools

import jax
import jax.numpy as jnp
from jax import lax
from jax.experimental import pallas as pl
from jax.experimental.pallas import tpu as pltpu

_LANE = 128
_EPS = 1e-6


@functools.partial(jax.jit, static_argnames=("block_rows", "num_chunks"))
def mse_log_loss(prediction, gt, *, block_rows=2048, num_chunks=2):
    assert prediction.shape == gt.shape
    assert block_rows % 8 == 0 and block_rows >= 8
    total = prediction.size

    # Flatten (free) and view as (rows, 128).  Zero-pad the flat tail only if
    # needed; padded gt==0 elements are excluded by the gt>0 mask.
    p = prediction.reshape(-1)
    g = gt.reshape(-1)
    rem = (-total) % _LANE
    if rem:
        # TODO(synk): the rare non-multiple-of-128 case pays one extra HBM
        # pass for the pad; fine for loss-sized tensors.
        p = jnp.pad(p, (0, rem))
        g = jnp.pad(g, (0, rem))
    rows = (total + rem) // _LANE
    p = p.reshape(rows, _LANE)
    g = g.reshape(rows, _LANE)

    # Don't use a tile vastly larger than the data (small inputs).
    block_rows = min(block_rows, pl.cdiv(rows, 16) * 16)

    rows_blocks = pl.cdiv(rows, block_rows)
    num_chunks_eff = max(1, min(num_chunks, rows_blocks))
    steps_per_chunk = pl.cdiv(rows_blocks, num_chunks_eff)

    # Static check: do any blocks contain out-of-bounds rows (grid-edge
    # partial block) or duplicated rows (clamped block from ragged chunking)?
    needs_mask = (
        rows_blocks * block_rows != rows
        or num_chunks_eff * steps_per_chunk != rows_blocks
    )

    def kernel(pred_ref, gt_ref, psum_ref, pcnt_ref, acc_sum, acc_cnt):
        c = pl.program_id(0)  # parallel chunk (megacore split on v7x)
        s = pl.program_id(1)  # sequential step within chunk

        @pl.when(s == 0)
        def _():
            acc_sum[...] = jnp.zeros_like(acc_sum)
            acc_cnt[...] = jnp.zeros_like(acc_cnt)

        pred = jnp.maximum(pred_ref[...].astype(jnp.float32), 0.0)
        gt_v = gt_ref[...].astype(jnp.float32)
        mask = gt_v > 0.0

        if needs_mask:
            # Drop rows beyond the true row count (grid-edge padding or
            # clamped duplicate blocks). Row-level check is sufficient: the
            # in-row lane-pad tail is already zero (gt==0 -> excluded).
            row_base = (c * steps_per_chunk + s) * block_rows
            row = lax.broadcasted_iota(jnp.int32, (block_rows, _LANE), 0)
            mask = jnp.logical_and(mask, row_base + row < rows)

        err = jnp.log(pred + _EPS) - jnp.log(gt_v + _EPS)
        sq = jnp.where(mask, err * err, 0.0)
        cnt = mask.astype(jnp.float32)

        # Fold (block_rows, 128) -> (8, 128).  The trailing (8, 128) of the
        # reshape is vreg-tile aligned (free); the sum over the leading group
        # axis is plain vreg-wise VPU adds, hidden under the input DMA.
        acc_sum[...] += sq.reshape(-1, 8, _LANE).sum(axis=0)
        acc_cnt[...] += cnt.reshape(-1, 8, _LANE).sum(axis=0)

        @pl.when(s == steps_per_chunk - 1)
        def _():
            psum_ref[0] = acc_sum[...]
            pcnt_ref[0] = acc_cnt[...]

    def in_map(c, s):
        idx = c * steps_per_chunk + s
        # Clamp so no fully out-of-range block DMA is issued; clamped
        # (duplicate) blocks are zeroed by the in-kernel row mask.
        return (jnp.minimum(idx, rows_blocks - 1), 0)

    def out_map(c, s):
        return (c, 0, 0)

    psum, pcnt = pl.pallas_call(
        kernel,
        out_shape=(
            jax.ShapeDtypeStruct((num_chunks_eff, 8, _LANE), jnp.float32),
            jax.ShapeDtypeStruct((num_chunks_eff, 8, _LANE), jnp.float32),
        ),
        grid=(num_chunks_eff, steps_per_chunk),
        in_specs=[
            pl.BlockSpec((block_rows, _LANE), in_map),
            pl.BlockSpec((block_rows, _LANE), in_map),
        ],
        out_specs=(
            pl.BlockSpec((1, 8, _LANE), out_map),
            pl.BlockSpec((1, 8, _LANE), out_map),
        ),
        scratch_shapes=[
            pltpu.VMEM((8, _LANE), jnp.float32),  # running sq-err partial
            pltpu.VMEM((8, _LANE), jnp.float32),  # running mask-count partial
        ],
        compiler_params=pltpu.CompilerParams(
            dimension_semantics=("parallel", "arbitrary"),
            # Default scoped VMEM is plenty (<= ~8 MiB double-buffered inputs
            # at block_rows=2048); set vmem_limit_bytes only if block_rows is
            # pushed past ~4096 on v5e.
        ),
    )(p, g)

    # Tiny final reduction + divide (NaN if no gt>0 element, like torch.mean
    # over an empty selection).
    return jnp.sum(psum) / jnp.sum(pcnt)


def _reference(prediction, gt):
    prediction = jnp.maximum(prediction, 0.0)
    err = jnp.log(prediction + _EPS) - jnp.log(gt + _EPS)
    mask = gt > 0.0
    sq = jnp.where(mask, err * err, 0.0)
    return jnp.sum(sq) / jnp.sum(mask.astype(jnp.float32))


if __name__ == "__main__":
    key = jax.random.PRNGKey(0)
    k1, k2, k3 = jax.random.split(key, 3)

    # NCHW inputs, like the PyTorch module (depth maps).
    shape = (2, 4, 16, 16)
    prediction = jax.random.uniform(k1, shape, jnp.float32, -0.5, 4.0)
    gt = jax.random.uniform(k2, shape, jnp.float32, 0.0, 5.0)
    # Zero out ~30% of gt so the mask actually does something.
    drop = jax.random.uniform(k3, shape) < 0.3
    gt = jnp.where(drop, 0.0, gt)

    loss = jax.block_until_ready(mse_log_loss(prediction, gt))
    ref = _reference(prediction, gt)
    assert jnp.allclose(loss, ref, rtol=1e-5, atol=1e-6), (loss, ref)

    # Ragged shape (total not a multiple of 128) with a small block size to
    # exercise the multi-chunk / multi-step / edge-masking paths.
    k4, k5, k6 = jax.random.split(jax.random.PRNGKey(1), 3)
    shape2 = (2, 3, 17, 23)
    p2 = jax.random.uniform(k4, shape2, jnp.float32, -0.5, 4.0)
    g2 = jax.random.uniform(k5, shape2, jnp.float32, 0.0, 5.0)
    g2 = jnp.where(jax.random.uniform(k6, shape2) < 0.3, 0.0, g2)
    loss2 = jax.block_until_ready(mse_log_loss(p2, g2, block_rows=16, num_chunks=2))
    ref2 = _reference(p2, g2)
    assert jnp.allclose(loss2, ref2, rtol=1e-5, atol=1e-6), (loss2, ref2)

    print("KERNEL_OK")
</pallas_src>

<mosaic_0001>
module attributes {stable_mosaic.version = 11 : i64} {
  func.func @kernel(%arg0: i32, %arg1: i32, %arg2: memref<16x128xf32, #tpu.memory_space<vmem>>, %arg3: memref<16x128xf32, #tpu.memory_space<vmem>>, %arg4: memref<1x8x128xf32, #tpu.memory_space<vmem>>, %arg5: memref<1x8x128xf32, #tpu.memory_space<vmem>>, %arg6: memref<8x128xf32, #tpu.memory_space<vmem>>, %arg7: memref<8x128xf32, #tpu.memory_space<vmem>>) attributes {dimension_semantics = [#tpu.dimension_semantics<parallel>, #tpu.dimension_semantics<arbitrary>], iteration_bounds = array<i64: 1, 1>, scalar_prefetch = 0 : i64, scratch_operands = 2 : i64, tpu.core_type = #tpu.core_type<tc>, window_params = [{transform_indices = @transform_0, window_bounds = array<i64: 16, 128>}, {transform_indices = @transform_1, window_bounds = array<i64: 16, 128>}, {transform_indices = @transform_2, window_bounds = array<i64: 1, 8, 128>}, {transform_indices = @transform_3, window_bounds = array<i64: 1, 8, 128>}]} {
    %c0_i32 = arith.constant 0 : i32
    %0 = arith.cmpi eq, %arg1, %c0_i32 : i32
    %1 = arith.extui %0 : i1 to i32
    %c0_i32_0 = arith.constant 0 : i32
    %2 = arith.cmpi ne, %1, %c0_i32_0 : i32
    scf.if %2 {
      %cst_20 = arith.constant 0.000000e+00 : f32
      %34 = vector.broadcast %cst_20 : f32 to vector<8x128xf32>
      %c0_21 = arith.constant 0 : index
      %c0_22 = arith.constant 0 : index
      %35 = vector.load %arg6[%c0_21, %c0_22] : memref<8x128xf32, #tpu.memory_space<vmem>>, vector<8x128xf32>
      tpu.vector_store %arg6[%c0_21, %c0_22], %34 {strides = array<i32>} : memref<8x128xf32, #tpu.memory_space<vmem>>, vector<8x128xf32>,
      %cst_23 = arith.constant 0.000000e+00 : f32
      %36 = vector.broadcast %cst_23 : f32 to vector<8x128xf32>
      %c0_24 = arith.constant 0 : index
      %c0_25 = arith.constant 0 : index
      %37 = vector.load %arg7[%c0_24, %c0_25] : memref<8x128xf32, #tpu.memory_space<vmem>>, vector<8x128xf32>
      tpu.vector_store %arg7[%c0_24, %c0_25], %36 {strides = array<i32>} : memref<8x128xf32, #tpu.memory_space<vmem>>, vector<8x128xf32>,
    } else {
    }
    %c0 = arith.constant 0 : index
    %c0_1 = arith.constant 0 : index
    %3 = vector.load %arg2[%c0, %c0_1] : memref<16x128xf32, #tpu.memory_space<vmem>>, vector<16x128xf32>
    %cst = arith.constant 0.000000e+00 : f32
    %4 = vector.broadcast %cst : f32 to vector<16x128xf32>
    %5 = arith.maximumf %3, %4 : vector<16x128xf32>
    %c0_2 = arith.constant 0 : index
    %c0_3 = arith.constant 0 : index
    %6 = vector.load %arg3[%c0_2, %c0_3] : memref<16x128xf32, #tpu.memory_space<vmem>>, vector<16x128xf32>
    %cst_4 = arith.constant 0.000000e+00 : f32
    %7 = vector.broadcast %cst_4 : f32 to vector<16x128xf32>
    %8 = arith.cmpf ogt, %6, %7 : vector<16x128xf32>
    %cst_5 = arith.constant 9.99999997E-7 : f32
    %9 = vector.broadcast %cst_5 : f32 to vector<16x128xf32>
    %10 = arith.addf %5, %9 : vector<16x128xf32>
    %11 = math.log %10 : vector<16x128xf32>
    %cst_6 = arith.constant 9.99999997E-7 : f32
    %12 = vector.broadcast %cst_6 : f32 to vector<16x128xf32>
    %13 = arith.addf %6, %12 : vector<16x128xf32>
    %14 = math.log %13 : vector<16x128xf32>
    %15 = arith.subf %11, %14 : vector<16x128xf32>
    %16 = arith.mulf %15, %15 : vector<16x128xf32>
    %cst_7 = arith.constant 0.000000e+00 : f32
    %17 = vector.broadcast %cst_7 : f32 to vector<16x128xf32>
    %18 = arith.select %8, %16, %17 : vector<16x128xi1>, vector<16x128xf32>
    %19 = arith.extui %8 : vector<16x128xi1> to vector<16x128xi32>
    %20 = arith.sitofp %19 : vector<16x128xi32> to vector<16x128xf32>
    %c0_8 = arith.constant 0 : index
    %c0_9 = arith.constant 0 : index
    %21 = vector.load %arg6[%c0_8, %c0_9] : memref<8x128xf32, #tpu.memory_space<vmem>>, vector<8x128xf32>
    %22 = vector.shape_cast %18 : vector<16x128xf32> to vector<2x8x128xf32>
    %cst_10 = arith.constant dense<0.000000e+00> : vector<8x128xf32>
    %23 = vector.multi_reduction <add>, %22, %cst_10 [0] : vector<2x8x128xf32> to vector<8x128xf32>
    %24 = arith.addf %21, %23 : vector<8x128xf32>
    %c0_11 = arith.constant 0 : index
    %c0_12 = arith.constant 0 : index
    %25 = vector.load %arg6[%c0_11, %c0_12] : memref<8x128xf32, #tpu.memory_space<vmem>>, vector<8x128xf32>
    tpu.vector_store %arg6[%c0_11, %c0_12], %24 {strides = array<i32>} : memref<8x128xf32, #tpu.memory_space<vmem>>, vector<8x128xf32>,
    %c0_13 = arith.constant 0 : index
    %c0_14 = arith.constant 0 : index
    %26 = vector.load %arg7[%c0_13, %c0_14] : memref<8x128xf32, #tpu.memory_space<vmem>>, vector<8x128xf32>
    %27 = vector.shape_cast %20 : vector<16x128xf32> to vector<2x8x128xf32>
    %cst_15 = arith.constant dense<0.000000e+00> : vector<8x128xf32>
    %28 = vector.multi_reduction <add>, %27, %cst_15 [0] : vector<2x8x128xf32> to vector<8x128xf32>
    %29 = arith.addf %26, %28 : vector<8x128xf32>
    %c0_16 = arith.constant 0 : index
    %c0_17 = arith.constant 0 : index
    %30 = vector.load %arg7[%c0_16, %c0_17] : memref<8x128xf32, #tpu.memory_space<vmem>>, vector<8x128xf32>
    tpu.vector_store %arg7[%c0_16, %c0_17], %29 {strides = array<i32>} : memref<8x128xf32, #tpu.memory_space<vmem>>, vector<8x128xf32>,
    %c0_i32_18 = arith.constant 0 : i32
    %31 = arith.cmpi eq, %arg1, %c0_i32_18 : i32
    %32 = arith.extui %31 : i1 to i32
    %c0_i32_19 = arith.constant 0 : i32
    %33 = arith.cmpi ne, %32, %c0_i32_19 : i32
    scf.if %33 {
      %c0_20 = arith.constant 0 : index
      %c0_21 = arith.constant 0 : index
      %34 = vector.load %arg6[%c0_20, %c0_21] : memref<8x128xf32, #tpu.memory_space<vmem>>, vector<8x128xf32>
      %c0_22 = arith.constant 0 : index
      %c0_23 = arith.constant 0 : index
      %c0_24 = arith.constant 0 : index
      %35 = vector.load %arg4[%c0_22, %c0_23, %c0_24] : memref<1x8x128xf32, #tpu.memory_space<vmem>>, vector<1x8x128xf32>
      %36 = vector.shape_cast %35 : vector<1x8x128xf32> to vector<8x128xf32>
      %37 = vector.shape_cast %34 : vector<8x128xf32> to vector<1x8x128xf32>
      tpu.vector_store %arg4[%c0_22, %c0_23, %c0_24], %37 {strides = array<i32>} : memref<1x8x128xf32, #tpu.memory_space<vmem>>, vector<1x8x128xf32>,
      %c0_25 = arith.constant 0 : index
      %c0_26 = arith.constant 0 : index
      %38 = vector.load %arg7[%c0_25, %c0_26] : memref<8x128xf32, #tpu.memory_space<vmem>>, vector<8x128xf32>
      %c0_27 = arith.constant 0 : index
      %c0_28 = arith.constant 0 : index
      %c0_29 = arith.constant 0 : index
      %39 = vector.load %arg5[%c0_27, %c0_28, %c0_29] : memref<1x8x128xf32, #tpu.memory_space<vmem>>, vector<1x8x128xf32>
      %40 = vector.shape_cast %39 : vector<1x8x128xf32> to vector<8x128xf32>
      %41 = vector.shape_cast %38 : vector<8x128xf32> to vector<1x8x128xf32>
      tpu.vector_store %arg5[%c0_27, %c0_28, %c0_29], %41 {strides = array<i32>} : memref<1x8x128xf32, #tpu.memory_space<vmem>>, vector<1x8x128xf32>,
    } else {
    }
    return
  }
  func.func @transform_0(%arg0: i32, %arg1: i32) -> (i32, i32) {
    %c1_i32 = arith.constant 1 : i32
    %0 = arith.muli %arg0, %c1_i32 : i32
    %1 = arith.addi %0, %arg1 : i32
    %c0_i32 = arith.constant 0 : i32
    %2 = arith.minsi %1, %c0_i32 : i32
    %c0_i32_0 = arith.constant 0 : i32
    %c0_i32_1 = arith.constant 0 : i32
    return %2, %c0_i32_0 : i32, i32
  }
  func.func @transform_1(%arg0: i32, %arg1: i32) -> (i32, i32) {
    %c1_i32 = arith.constant 1 : i32
    %0 = arith.muli %arg0, %c1_i32 : i32
    %1 = arith.addi %0, %arg1 : i32
    %c0_i32 = arith.constant 0 : i32
    %2 = arith.minsi %1, %c0_i32 : i32
    %c0_i32_0 = arith.constant 0 : i32
    %c0_i32_1 = arith.constant 0 : i32
    return %2, %c0_i32_0 : i32, i32
  }
  func.func @transform_2(%arg0: i32, %arg1: i32) -> (i32, i32, i32) {
    %c0_i32 = arith.constant 0 : i32
    %c0_i32_0 = arith.constant 0 : i32
    %c0_i32_1 = arith.constant 0 : i32
    return %arg0, %c0_i32, %c0_i32_0 : i32, i32, i32
  }
  func.func @transform_3(%arg0: i32, %arg1: i32) -> (i32, i32, i32) {
    %c0_i32 = arith.constant 0 : i32
    %c0_i32_0 = arith.constant 0 : i32
    %c0_i32_1 = arith.constant 0 : i32
    return %arg0, %c0_i32, %c0_i32_0 : i32, i32, i32
  }
}

</mosaic_0001>

<llo_original>
// kernel: mse_log_loss.1
$region0: #{mse_log_loss.1}
  #allocation0 [shape = 'u32[]', space=smem, size = 0x4, offset = 0x4, fixed_abs, tag = 'smem constant byte address 0x4 - core index']
  #allocation1 [shape = 'u32[72,128]{1,0:T(1,128)}', space=vmem, size = 0x9000, scoped, tag = 'internal scratch']
  #allocation2 [shape = 'f32[8,128]{1,0:T(8,128)}', space=vmem, size = 0x1000, scoped, tag = 'scratch operand']
  #allocation3 [shape = 'f32[8,128]{1,0:T(8,128)}', space=vmem, size = 0x1000, scoped, tag = 'scratch operand']
  %s0 = inlined_call_operand.vmem [shape: f32[16,128], index: 0, kind: input, shape index: {}]
  %s1 = inlined_call_operand.vmem [shape: f32[16,128], index: 1, kind: input, shape index: {}]
  %s2 = inlined_call_operand.vmem [shape: f32[1,8,128], index: 2, kind: output, shape index: {0}]
  %s3 = inlined_call_operand.vmem [shape: f32[1,8,128], index: 3, kind: output, shape index: {1}]
  %4 = xla_tuple %s2, %s3
  %s5 = sld [smem:[#allocation0]]
  $region34: #{mse_log_loss.1} parent=0
    _
  %s7 = ssub.s32 1, %s5
  %s8 = scalar_select 0, %s7, %s5
  // Predicated region
  $region2: #{mse_log_loss.1} parent=0 // pred_check
    _
  $region3: #{mse_log_loss.1} parent=0 // pred_check_branch
    %10 = sbr.rel (0) target = $region5
  $region4: #{mse_log_loss.1} parent=0 // pred_region
    %s11 = sadd.s32 0, 0
    %p12 = scmp.lt.s32.totalorder %s11, 0
    %s13 = scalar_select %p12, %s11, 0
    %s14 = smul.u32 2, %s13
    %p15 = scmp.lt.s32.totalorder %s14, 1
    %s16 = scalar_select %p15, %s14, 1
    %s17 = smul.addr %s16, 8
    %s18 = scalar_lea.vmem %s0, %s17
    %s19 = sadd.s32 0, 0
    %p20 = scmp.lt.s32.totalorder %s19, 0
    %s21 = scalar_select %p20, %s19, 0
    %s22 = smul.u32 2, %s21
  $region5: #{mse_log_loss.1} parent=0 // pred_fallthru
    _
  // Predicated region
  $region6: #{mse_log_loss.1} parent=0 // pred_check
    _
  $region7: #{mse_log_loss.1} parent=0 // pred_check_branch
    %24 = sbr.rel (0) target = $region9
  $region8: #{mse_log_loss.1} parent=0 // pred_region
    %s25 = sadd.s32 0, 0
    %p26 = scmp.lt.s32.totalorder %s25, 0
    %s27 = scalar_select %p26, %s25, 0
    %s28 = smul.u32 2, %s27
    %p29 = scmp.lt.s32.totalorder %s28, 1
    %s30 = scalar_select %p29, %s28, 1
    %s31 = smul.addr %s30, 8
    %s32 = scalar_lea.vmem %s1, %s31
    %s33 = sadd.s32 0, 0
    %p34 = scmp.lt.s32.totalorder %s33, 0
    %s35 = scalar_select %p34, %s33, 0
    %s36 = smul.u32 2, %s35
  $region9: #{mse_log_loss.1} parent=0 // pred_fallthru
    _
  %s37 = sadd.s32 0, 0
  %p38 = scmp.lt.s32.totalorder %s37, 0
  %s39 = scalar_select %p38, %s37, 0
  %s40 = smul.u32 2, %s39
  %p41 = scmp.lt.s32.totalorder %s40, 1
  %s42 = scalar_select %p41, %s40, 1
  %s43 = smul.addr %s42, 8
  %s44 = scalar_lea.vmem %s0, %s43
  %s45 = sadd.s32 0, 0
  %p46 = scmp.lt.s32.totalorder %s45, 0
  %s47 = scalar_select %p46, %s45, 0
  %s48 = smul.u32 2, %s47
  %p49 = scmp.lt.s32.totalorder %s48, 1
  %s50 = scalar_select %p49, %s48, 1
  %s51 = smul.addr %s50, 8
  %s52 = scalar_lea.vmem %s1, %s51
  %s53 = sadd.s32 0, 0
  %p54 = scmp.lt.s32.totalorder %s53, 0
  %s55 = scalar_select %p54, %s53, 0
  %s56 = smul.u32 2, %s55
  %p57 = scmp.lt.s32.totalorder %s56, 1
  %s58 = scalar_select %p57, %s56, 1
  %s59 = smul.addr %s58, 8
  %s60 = scalar_lea.vmem %s0, %s59
  %s61 = sadd.s32 0, 0
  %p62 = scmp.lt.s32.totalorder %s61, 0
  %s63 = scalar_select %p62, %s61, 0
  %s64 = smul.u32 2, %s63
  %s65 = sadd.s32 0, 0
  %p66 = scmp.lt.s32.totalorder %s65, 0
  %s67 = scalar_select %p66, %s65, 0
  %s68 = smul.u32 2, %s67
  %p69 = scmp.lt.s32.totalorder %s68, 1
  %s70 = scalar_select %p69, %s68, 1
  %s71 = smul.addr %s70, 8
  %s72 = scalar_lea.vmem %s1, %s71
  %s73 = sadd.s32 0, 0
  %p74 = scmp.lt.s32.totalorder %s73, 0
  %s75 = scalar_select %p74, %s73, 0
  %s76 = smul.u32 2, %s75
  %p77 = scmp.eq.s32.totalorder 0, 0
  // Predicated region
  $region10: #{mse_log_loss.1} parent=0 // pred_check
    %p78 = pneg %p77
  $region11: #{mse_log_loss.1} parent=0 // pred_check_branch
    %80 = sbr.rel (%p78) target = $region13
  $region12: #{mse_log_loss.1} parent=0 // pred_region
    %81 = vst [vmem:[#allocation2] sm:$0xff] 0.0
    %82 = vst [vmem:[#allocation3] sm:$0xff] 0.0
  $region13: #{mse_log_loss.1} parent=0 // pred_fallthru
    _
  %v83 = vld [vmem:[%s60] sm:$0xff]
  %v84 = vld [vmem:[%s60 + $0x8] sm:$0xff]
  %v85 = vmax.f32 %v83, 0.0
  %v86 = vmax.f32 %v84, 0.0
  %v87 = vld [vmem:[%s72] sm:$0xff]
  %v88 = vld [vmem:[%s72 + $0x8] sm:$0xff]
  %vm89 = vcmp.gt.f32.partialorder %v87, 0.0
  %vm90 = vcmp.gt.f32.partialorder %v88, 0.0
  %v91 = vadd.f32 %v85, 1e-06
  %v92 = vadd.f32 %v86, 1e-06
  %v93 = vlog2.pop %v91
  %v94 = vmul.f32 %v93, 0.6931472
  %v95 = vlog2.pop %v92
  %v96 = vmul.f32 %v95, 0.6931472
  %v97 = vadd.f32 %v87, 1e-06
  %v98 = vadd.f32 %v88, 1e-06
  %v99 = vlog2.pop %v97
  %v100 = vmul.f32 %v99, 0.6931472
  %v101 = vlog2.pop %v98
  %v102 = vmul.f32 %v101, 0.6931472
  %v103 = vsub.f32 %v94, %v100
  %v104 = vsub.f32 %v96, %v102
  %v105 = vmul.f32 %v103, %v103
  %v106 = vmul.f32 %v104, %v104
  %v107 = vsel %vm89, %v105, 0.0
  %v108 = vsel %vm90, %v106, 0.0
  %v109 = vsel %vm89, 1, 0
  %v110 = vsel %vm90, 1, 0
  %v111 = vcvt.s32.f32 %v109
  %v112 = vcvt.s32.f32 %v110
  %v113 = vld [vmem:[#allocation2] sm:$0xff]
  %v114 = vadd.f32 %v107, %v108
  %v115 = vadd.f32 %v113, %v114
  %116 = vst [vmem:[#allocation2] sm:$0xff] %v115
  %v117 = vld [vmem:[#allocation3] sm:$0xff]
  %v118 = vadd.f32 %v111, %v112
  %v119 = vadd.f32 %v117, %v118
  %120 = vst [vmem:[#allocation3] sm:$0xff] %v119
  // Predicated region
  $region14: #{mse_log_loss.1} parent=0 // pred_check
    %p121 = pneg %p77
  $region15: #{mse_log_loss.1} parent=0 // pred_check_branch
    %123 = sbr.rel (%p121) target = $region17
  $region16: #{mse_log_loss.1} parent=0 // pred_region
    %v124 = vld [vmem:[#allocation2] sm:$0xff]
    %125 = vst [vmem:[%s2] sm:$0xff] %v124
    %v126 = vld [vmem:[#allocation3] sm:$0xff]
    %127 = vst [vmem:[%s3] sm:$0xff] %v126
  $region17: #{mse_log_loss.1} parent=0 // pred_fallthru
    _
  // Predicated region
  $region18: #{mse_log_loss.1} parent=0 // pred_check
    _
  $region19: #{mse_log_loss.1} parent=0 // pred_check_branch
    %129 = sbr.rel (0) target = $region21
  $region20: #{mse_log_loss.1} parent=0 // pred_region
    _
  $region21: #{mse_log_loss.1} parent=0 // pred_fallthru
    _
  // Predicated region
  $region22: #{mse_log_loss.1} parent=0 // pred_check
    _
  $region23: #{mse_log_loss.1} parent=0 // pred_check_branch
    %131 = sbr.rel (0) target = $region25
  $region24: #{mse_log_loss.1} parent=0 // pred_region
    _
  $region25: #{mse_log_loss.1} parent=0 // pred_fallthru
    _
  // Predicated region
  $region26: #{mse_log_loss.1} parent=0 // pred_check
    _
  $region27: #{mse_log_loss.1} parent=0 // pred_check_branch
    %133 = sbr.rel (0) target = $region29
  $region28: #{mse_log_loss.1} parent=0 // pred_region
    _
  $region29: #{mse_log_loss.1} parent=0 // pred_fallthru
    _
  // Predicated region
  $region30: #{mse_log_loss.1} parent=0 // pred_check
    _
  $region31: #{mse_log_loss.1} parent=0 // pred_check_branch
    %135 = sbr.rel (0) target = $region33
  $region32: #{mse_log_loss.1} parent=0 // pred_region
    _
  $region33: #{mse_log_loss.1} parent=0 // pred_fallthru
    _

</llo_original>
